<compile_context>
chip_gen: v5e
topology: v5e:2x2
jax: 0.10.0
libtpu: 0.0.40
codegen_flags: <defaults>
</compile_context>

<pallas_src>
import functools
import math

import jax
import jax.numpy as jnp
from jax.experimental import pallas as pl
from jax.experimental.pallas import tpu as pltpu


def _round_up(x, m):
    return (x + m - 1) // m * m


def _physical_vmem_bytes():
    """Per-TensorCore VMEM capacity; conservative v7x fallback (64 MiB)."""
    try:
        info = pltpu.get_tpu_info()
        cap = int(getattr(info, "vmem_capacity_bytes", 0))
        if cap > 0:
            return cap
    except Exception:
        pass
    return 64 * 1024 * 1024


def _erf(x, *, approx_recip):
    # Abramowitz & Stegun 7.1.26 rational approximation (max abs err ~1.5e-7,
    # i.e. f32-level accuracy).  Built only from abs/exp/mul/add/where so it
    # lowers cleanly in Mosaic; matches torch.nn.GELU()'s exact-erf form.
    a1 = 0.254829592
    a2 = -0.284496736
    a3 = 1.421413741
    a4 = -1.453152027
    a5 = 1.061405429
    p = 0.3275911
    ax = jnp.abs(x)
    d = 1.0 + p * ax
    # EUP reciprocal on the fast path (frees VALU slots, esp. on v5e);
    # exact divide on the f32-validation path.
    t = pl.reciprocal(d, approx=True) if approx_recip else 1.0 / d
    poly = ((((a5 * t + a4) * t + a3) * t + a2) * t + a1) * t
    y = 1.0 - poly * jnp.exp(-ax * ax)
    return jnp.where(x >= 0.0, y, -y)


def _gelu_exact(x, *, approx_recip):
    return 0.5 * x * (1.0 + _erf(x * 0.7071067811865476,
                                 approx_recip=approx_recip))


def _mlp_kernel(x_ref, w1_ref, b1_ref, w2_ref, b2_ref, o_ref, acc_ref, *,
                approx_recip):
    # Grid = (M tiles [parallel], hidden chunks [arbitrary / reduction]).
    j = pl.program_id(1)

    @pl.when(j == 0)
    def _init():
        acc_ref[...] = jnp.zeros_like(acc_ref)

    # fc1 chunk on the MXU with f32 accumulation; bias + exact-erf GELU in f32.
    h = jnp.dot(x_ref[...], w1_ref[...], preferred_element_type=jnp.float32)
    h = _gelu_exact(h + b1_ref[...], approx_recip=approx_recip)
    # Dropout(p=0.1): inference-mode identity.
    # TODO(synk): training-mode dropout (PRNG mask) not implemented.
    acc_ref[...] += jnp.dot(h.astype(w2_ref.dtype), w2_ref[...],
                            preferred_element_type=jnp.float32)

    @pl.when(j == pl.num_programs(1) - 1)
    def _finalize():
        o_ref[...] = (acc_ref[...] + b2_ref[...]).astype(o_ref.dtype)


def prepare_mlp_params(w1, b1, w2, b2, *, op_dtype=jnp.bfloat16, tile_h=1024):
    """Pad + cast weights ONCE at setup (hoisted out of the per-call path).

    w1: (dim, hidden), b1: (hidden,)   -- fc1 in math layout (x @ w1 + b1)
    w2: (hidden, dim), b2: (dim,)      -- fc2 in math layout (h @ w2 + b2)
    Returns (padded params tuple, meta dict with static tiling config).
    """
    dim, hidden = w1.shape
    assert w2.shape == (hidden, dim)
    assert b1.shape == (hidden,) and b2.shape == (dim,)

    Dp = _round_up(dim, 128)                      # lane-aligned feature dim
    th = _round_up(min(tile_h, hidden), 128)      # hidden chunk (grid axis 1)
    Hp = _round_up(hidden, th)

    # Zero padding is value-safe: padded K columns/rows contribute 0, padded
    # hidden columns give gelu(0)=0 which contributes 0 through w2's padded
    # rows, and padded output columns are exactly 0 and are sliced off.
    w1_p = jnp.pad(w1, ((0, Dp - dim), (0, Hp - hidden))).astype(op_dtype)
    w2_p = jnp.pad(w2, ((0, Hp - hidden), (0, Dp - dim))).astype(op_dtype)
    b1_p = jnp.pad(b1.astype(jnp.float32), (0, Hp - hidden)).reshape(1, Hp)
    b2_p = jnp.pad(b2.astype(jnp.float32), (0, Dp - dim)).reshape(1, Dp)

    meta = dict(dim=dim, hidden=hidden, tile_h=th)
    return (w1_p, b1_p, w2_p, b2_p), meta


def mlp_forward(x, w1_p, b1_p, w2_p, b2_p, *, dim, tile_h, tile_m=512):
    """Fused Mlp forward on pre-padded params (see prepare_mlp_params)."""
    orig_shape = x.shape
    assert orig_shape[-1] == dim

    Dp, Hp = w1_p.shape
    th = tile_h
    assert Hp % th == 0 and w2_p.shape == (Hp, Dp)

    op_dtype = w1_p.dtype
    out_dtype = x.dtype
    approx_recip = op_dtype == jnp.bfloat16      # fast epilogue on bf16 path

    x2d = x.reshape(-1, dim)
    M = x2d.shape[0]

    # ---- M tiling: sublane-aligned tm; keep >=2 M-grid steps when possible
    #      so v7x megacore ("parallel" axis) has work for both TensorCores.
    tm = min(tile_m, _round_up(M, 8))
    if tm >= 16 and tm >= _round_up(M, 8):       # would collapse to 1 step
        tm = max(8, _round_up(tm // 2, 8))

    # ---- VMEM budget (static Python arithmetic): double-buffered streaming
    #      tiles + weight chunks + f32 accumulator + fc1 intermediate.
    in_b = jnp.dtype(op_dtype).itemsize
    out_b = jnp.dtype(out_dtype).itemsize

    def footprint(tm_):
        return (2 * tm_ * Dp * in_b                    # x tiles (dbl-buffered)
                + 2 * tm_ * Dp * out_b                 # out tiles
                + 2 * (Dp * th + th * Dp) * in_b       # w1/w2 chunks
                + 2 * (Hp + Dp) * 4                    # biases
                + tm_ * Dp * 4                         # f32 accumulator
                + tm_ * th * 4)                        # fc1 intermediate

    cap = _physical_vmem_bytes()
    budget = int(cap * 0.7)                            # leave compiler headroom
    while footprint(tm) > budget and tm > 8:
        tm = max(8, _round_up(tm // 2, 8))
    vmem_limit = min(int(cap * 0.85),
                     max(2 * footprint(tm), 32 * 1024 * 1024))

    Mp = _round_up(M, tm)
    x_p = jnp.pad(x2d, ((0, Mp - M), (0, Dp - dim))).astype(op_dtype)  # 1 cast

    grid = (Mp // tm, Hp // th)

    cost = pl.CostEstimate(
        flops=4 * Mp * Dp * Hp,                 # two matmuls, 2 flops/MAC
        transcendentals=Mp * Hp,                # one exp per hidden element
        bytes_accessed=(Mp * Dp * in_b + 2 * Dp * Hp * in_b
                        + (Hp + Dp) * 4 + Mp * Dp * out_b),
    )

    out = pl.pallas_call(
        functools.partial(_mlp_kernel, approx_recip=approx_recip),
        out_shape=jax.ShapeDtypeStruct((Mp, Dp), out_dtype),
        grid_spec=pltpu.PrefetchScalarGridSpec(
            num_scalar_prefetch=0,
            grid=grid,
            in_specs=[
                pl.BlockSpec((tm, Dp), lambda i, j: (i, 0)),   # x tile: streams
                pl.BlockSpec((Dp, th), lambda i, j: (0, j)),   # w1 chunk
                pl.BlockSpec((1, th), lambda i, j: (0, j)),    # b1 chunk
                pl.BlockSpec((th, Dp), lambda i, j: (j, 0)),   # w2 chunk
                pl.BlockSpec((1, Dp), lambda i, j: (0, 0)),    # b2: resident
            ],
            out_specs=pl.BlockSpec((tm, Dp), lambda i, j: (i, 0)),
            scratch_shapes=[pltpu.VMEM((tm, Dp), jnp.float32)],
        ),
        compiler_params=pltpu.CompilerParams(
            dimension_semantics=("parallel", "arbitrary"),
            vmem_limit_bytes=int(vmem_limit),
        ),
        cost_estimate=cost,
    )(x_p, w1_p, b1_p, w2_p, b2_p)

    return out[:M, :dim].reshape(orig_shape)


# ----------------------------------------------------------------------------
if __name__ == "__main__":
    B, N, dim, hidden = 2, 8, 128, 512   # module fixes hidden=512

    key = jax.random.PRNGKey(0)
    kx, k1, k2, kb1, kb2 = jax.random.split(key, 5)

    x = jax.random.normal(kx, (B, N, dim), jnp.float32)
    # Xavier-uniform weights / tiny-normal biases, matching Mlp._init_weights.
    lim1 = math.sqrt(6.0 / (dim + hidden))
    lim2 = math.sqrt(6.0 / (hidden + dim))
    w1 = jax.random.uniform(k1, (dim, hidden), jnp.float32, -lim1, lim1)
    w2 = jax.random.uniform(k2, (hidden, dim), jnp.float32, -lim2, lim2)
    b1 = 1e-6 * jax.random.normal(kb1, (hidden,), jnp.float32)
    b2 = 1e-6 * jax.random.normal(kb2, (dim,), jnp.float32)

    # Pure-JAX reference: fc2(gelu(fc1(x))) with exact-erf GELU, dropout = id.
    ref = jax.nn.gelu(x @ w1 + b1, approximate=False) @ w2 + b2

    # Default (perf) path: bf16 MXU operands, f32 accumulation + epilogue.
    params_bf16, meta = prepare_mlp_params(w1, b1, w2, b2,
                                           op_dtype=jnp.bfloat16)
    fwd_bf16 = jax.jit(functools.partial(
        mlp_forward, dim=meta["dim"], tile_h=meta["tile_h"], tile_m=512))
    out_bf16 = jax.block_until_ready(fwd_bf16(x, *params_bf16))
    assert out_bf16.shape == (B, N, dim), out_bf16.shape
    assert bool(jnp.all(jnp.isfinite(out_bf16)))
    assert jnp.allclose(out_bf16, ref, atol=5e-2, rtol=5e-2), \
        float(jnp.max(jnp.abs(out_bf16 - ref)))

    # Exact f32 path (numerics validation of the same fused kernel).
    params_f32, meta32 = prepare_mlp_params(w1, b1, w2, b2,
                                            op_dtype=jnp.float32)
    fwd_f32 = jax.jit(functools.partial(
        mlp_forward, dim=meta32["dim"], tile_h=meta32["tile_h"], tile_m=512))
    out_f32 = jax.block_until_ready(fwd_f32(x, *params_f32))
    assert bool(jnp.all(jnp.isfinite(out_f32)))
    assert jnp.allclose(out_f32, ref, atol=1e-4, rtol=1e-4), \
        float(jnp.max(jnp.abs(out_f32 - ref)))

    print("KERNEL_OK")
</pallas_src>

<mosaic_0001>
module attributes {stable_mosaic.version = 11 : i64} {
  func.func @_mlp_kernel(%arg0: i32, %arg1: i32, %arg2: memref<8x128xbf16, #tpu.memory_space<vmem>>, %arg3: memref<128x512xbf16, #tpu.memory_space<vmem>>, %arg4: memref<1x512xf32, #tpu.memory_space<vmem>>, %arg5: memref<512x128xbf16, #tpu.memory_space<vmem>>, %arg6: memref<1x128xf32, #tpu.memory_space<vmem>>, %arg7: memref<8x128xf32, #tpu.memory_space<vmem>>, %arg8: memref<8x128xf32, #tpu.memory_space<vmem>>) attributes {dimension_semantics = [#tpu.dimension_semantics<parallel>, #tpu.dimension_semantics<arbitrary>], iteration_bounds = array<i64: 2, 1>, scalar_prefetch = 0 : i64, scratch_operands = 1 : i64, tpu.core_type = #tpu.core_type<tc>, window_params = [{transform_indices = @transform_0, window_bounds = array<i64: 8, 128>}, {transform_indices = @transform_1, window_bounds = array<i64: 128, 512>}, {transform_indices = @transform_2, window_bounds = array<i64: 1, 512>}, {transform_indices = @transform_3, window_bounds = array<i64: 512, 128>}, {pipeline_mode = #tpu.pipeline_mode<synchronous>, transform_indices = @transform_4, window_bounds = array<i64: 1, 128>}, {transform_indices = @transform_5, window_bounds = array<i64: 8, 128>}]} {
    %c0_i32 = arith.constant 0 : i32
    %0 = arith.cmpi eq, %arg1, %c0_i32 : i32
    %1 = arith.extui %0 : i1 to i32
    %c0_i32_0 = arith.constant 0 : i32
    %2 = arith.cmpi ne, %1, %c0_i32_0 : i32
    scf.if %2 {
      %cst_29 = arith.constant 0.000000e+00 : f32
      %57 = vector.broadcast %cst_29 : f32 to vector<8x128xf32>
      %c0_30 = arith.constant 0 : index
      %c0_31 = arith.constant 0 : index
      %58 = vector.load %arg8[%c0_30, %c0_31] : memref<8x128xf32, #tpu.memory_space<vmem>>, vector<8x128xf32>
      tpu.vector_store %arg8[%c0_30, %c0_31], %57 {strides = array<i32>} : memref<8x128xf32, #tpu.memory_space<vmem>>, vector<8x128xf32>,
    } else {
    }
    %c0 = arith.constant 0 : index
    %c0_1 = arith.constant 0 : index
    %3 = vector.load %arg2[%c0, %c0_1] : memref<8x128xbf16, #tpu.memory_space<vmem>>, vector<8x128xbf16>
    %c0_2 = arith.constant 0 : index
    %c0_3 = arith.constant 0 : index
    %4 = vector.load %arg3[%c0_2, %c0_3] : memref<128x512xbf16, #tpu.memory_space<vmem>>, vector<128x512xbf16>
    %cst = arith.constant dense<0.000000e+00> : vector<8x512xf32>
    %5 = tpu.matmul %3, %4, %cst {dimension_numbers = #tpu.dot_dimension_numbers<[1], [0], [0], [1], [0, 0, 1, 1], [], []>} : vector<8x128xbf16>, vector<128x512xbf16>, vector<8x512xf32> -> vector<8x512xf32>
    %c0_4 = arith.constant 0 : index
    %c0_5 = arith.constant 0 : index
    %6 = vector.load %arg4[%c0_4, %c0_5] : memref<1x512xf32, #tpu.memory_space<vmem>>, vector<1x512xf32>
    %7 = vector.broadcast %6 : vector<1x512xf32> to vector<8x512xf32>
    %8 = arith.addf %5, %7 : vector<8x512xf32>
    %cst_6 = arith.constant 5.000000e-01 : f32
    %9 = vector.broadcast %cst_6 : f32 to vector<8x512xf32>
    %10 = arith.mulf %9, %8 : vector<8x512xf32>
    %cst_7 = arith.constant 0.707106769 : f32
    %11 = vector.broadcast %cst_7 : f32 to vector<8x512xf32>
    %12 = arith.mulf %8, %11 : vector<8x512xf32>
    %13 = math.absf %12 : vector<8x512xf32>
    %cst_8 = arith.constant 0.327591091 : f32
    %14 = vector.broadcast %cst_8 : f32 to vector<8x512xf32>
    %15 = arith.mulf %14, %13 : vector<8x512xf32>
    %cst_9 = arith.constant 1.000000e+00 : f32
    %16 = vector.broadcast %cst_9 : f32 to vector<8x512xf32>
    %17 = arith.addf %16, %15 : vector<8x512xf32>
    %18 = tpu.reciprocal %17 {approx = true} : vector<8x512xf32> -> vector<8x512xf32>
    %cst_10 = arith.constant 1.06140542 : f32
    %19 = vector.broadcast %cst_10 : f32 to vector<8x512xf32>
    %20 = arith.mulf %19, %18 : vector<8x512xf32>
    %cst_11 = arith.constant -1.45315206 : f32
    %21 = vector.broadcast %cst_11 : f32 to vector<8x512xf32>
    %22 = arith.addf %20, %21 : vector<8x512xf32>
    %23 = arith.mulf %22, %18 : vector<8x512xf32>
    %cst_12 = arith.constant 1.42141378 : f32
    %24 = vector.broadcast %cst_12 : f32 to vector<8x512xf32>
    %25 = arith.addf %23, %24 : vector<8x512xf32>
    %26 = arith.mulf %25, %18 : vector<8x512xf32>
    %cst_13 = arith.constant -0.284496725 : f32
    %27 = vector.broadcast %cst_13 : f32 to vector<8x512xf32>
    %28 = arith.addf %26, %27 : vector<8x512xf32>
    %29 = arith.mulf %28, %18 : vector<8x512xf32>
    %cst_14 = arith.constant 0.254829586 : f32
    %30 = vector.broadcast %cst_14 : f32 to vector<8x512xf32>
    %31 = arith.addf %29, %30 : vector<8x512xf32>
    %32 = arith.mulf %31, %18 : vector<8x512xf32>
    %cst_15 = arith.constant 0.000000e+00 : f32
    %33 = vector.broadcast %cst_15 : f32 to vector<8x512xf32>
    %34 = arith.subf %33, %13 : vector<8x512xf32>
    %35 = arith.mulf %34, %13 : vector<8x512xf32>
    %36 = math.exp %35 : vector<8x512xf32>
    %37 = arith.mulf %32, %36 : vector<8x512xf32>
    %cst_16 = arith.constant 1.000000e+00 : f32
    %38 = vector.broadcast %cst_16 : f32 to vector<8x512xf32>
    %39 = arith.subf %38, %37 : vector<8x512xf32>
    %cst_17 = arith.constant 0.000000e+00 : f32
    %40 = vector.broadcast %cst_17 : f32 to vector<8x512xf32>
    %41 = arith.cmpf oge, %12, %40 : vector<8x512xf32>
    %cst_18 = arith.constant 0.000000e+00 : f32
    %42 = vector.broadcast %cst_18 : f32 to vector<8x512xf32>
    %43 = arith.subf %42, %39 : vector<8x512xf32>
    %44 = arith.select %41, %39, %43 : vector<8x512xi1>, vector<8x512xf32>
    %cst_19 = arith.constant 1.000000e+00 : f32
    %45 = vector.broadcast %cst_19 : f32 to vector<8x512xf32>
    %46 = arith.addf %45, %44 : vector<8x512xf32>
    %47 = arith.mulf %10, %46 : vector<8x512xf32>
    %c0_20 = arith.constant 0 : index
    %c0_21 = arith.constant 0 : index
    %48 = vector.load %arg8[%c0_20, %c0_21] : memref<8x128xf32, #tpu.memory_space<vmem>>, vector<8x128xf32>
    %49 = arith.truncf %47 : vector<8x512xf32> to vector<8x512xbf16>
    %c0_22 = arith.constant 0 : index
    %c0_23 = arith.constant 0 : index
    %50 = vector.load %arg5[%c0_22, %c0_23] : memref<512x128xbf16, #tpu.memory_space<vmem>>, vector<512x128xbf16>
    %cst_24 = arith.constant dense<0.000000e+00> : vector<8x128xf32>
    %51 = tpu.matmul %49, %50, %cst_24 {dimension_numbers = #tpu.dot_dimension_numbers<[1], [0], [0], [1], [0, 0, 1, 1], [], []>} : vector<8x512xbf16>, vector<512x128xbf16>, vector<8x128xf32> -> vector<8x128xf32>
    %52 = arith.addf %48, %51 : vector<8x128xf32>
    %c0_25 = arith.constant 0 : index
    %c0_26 = arith.constant 0 : index
    %53 = vector.load %arg8[%c0_25, %c0_26] : memref<8x128xf32, #tpu.memory_space<vmem>>, vector<8x128xf32>
    tpu.vector_store %arg8[%c0_25, %c0_26], %52 {strides = array<i32>} : memref<8x128xf32, #tpu.memory_space<vmem>>, vector<8x128xf32>,
    %c0_i32_27 = arith.constant 0 : i32
    %54 = arith.cmpi eq, %arg1, %c0_i32_27 : i32
    %55 = arith.extui %54 : i1 to i32
    %c0_i32_28 = arith.constant 0 : i32
    %56 = arith.cmpi ne, %55, %c0_i32_28 : i32
    scf.if %56 {
      %c0_29 = arith.constant 0 : index
      %c0_30 = arith.constant 0 : index
      %57 = vector.load %arg8[%c0_29, %c0_30] : memref<8x128xf32, #tpu.memory_space<vmem>>, vector<8x128xf32>
      %c0_31 = arith.constant 0 : index
      %c0_32 = arith.constant 0 : index
      %58 = vector.load %arg6[%c0_31, %c0_32] : memref<1x128xf32, #tpu.memory_space<vmem>>, vector<1x128xf32>
      %59 = vector.broadcast %58 : vector<1x128xf32> to vector<8x128xf32>
      %60 = arith.addf %57, %59 : vector<8x128xf32>
      %c0_33 = arith.constant 0 : index
      %c0_34 = arith.constant 0 : index
      %61 = vector.load %arg7[%c0_33, %c0_34] : memref<8x128xf32, #tpu.memory_space<vmem>>, vector<8x128xf32>
      tpu.vector_store %arg7[%c0_33, %c0_34], %60 {strides = array<i32>} : memref<8x128xf32, #tpu.memory_space<vmem>>, vector<8x128xf32>,
    } else {
    }
    return
  }
  func.func @transform_0(%arg0: i32, %arg1: i32) -> (i32, i32) {
    %c0_i32 = arith.constant 0 : i32
    %c0_i32_0 = arith.constant 0 : i32
    return %arg0, %c0_i32 : i32, i32
  }
  func.func @transform_1(%arg0: i32, %arg1: i32) -> (i32, i32) {
    %c0_i32 = arith.constant 0 : i32
    %c0_i32_0 = arith.constant 0 : i32
    return %c0_i32, %arg1 : i32, i32
  }
  func.func @transform_2(%arg0: i32, %arg1: i32) -> (i32, i32) {
    %c0_i32 = arith.constant 0 : i32
    %c0_i32_0 = arith.constant 0 : i32
    return %c0_i32, %arg1 : i32, i32
  }
  func.func @transform_3(%arg0: i32, %arg1: i32) -> (i32, i32) {
    %c0_i32 = arith.constant 0 : i32
    %c0_i32_0 = arith.constant 0 : i32
    return %arg1, %c0_i32 : i32, i32
  }
  func.func @transform_4(%arg0: i32, %arg1: i32) -> (i32, i32) {
    %c0_i32 = arith.constant 0 : i32
    %c0_i32_0 = arith.constant 0 : i32
    %c0_i32_1 = arith.constant 0 : i32
    return %c0_i32, %c0_i32_0 : i32, i32
  }
  func.func @transform_5(%arg0: i32, %arg1: i32) -> (i32, i32) {
    %c0_i32 = arith.constant 0 : i32
    %c0_i32_0 = arith.constant 0 : i32
    return %arg0, %c0_i32 : i32, i32
  }
}

</mosaic_0001>

<llo_original>
// kernel: mlp_forward.1
$region0: #{mlp_forward.1}
  #allocation0 [shape = 'u32[]', space=smem, size = 0x4, offset = 0x4, fixed_abs, tag = 'smem constant byte address 0x4 - core index']
  #allocation1 [shape = 'u32[72,128]{1,0:T(1,128)}', space=vmem, size = 0x9000, scoped, tag = 'internal scratch']
  #allocation2 [shape = 'f32[8,128]{1,0:T(8,128)}', space=vmem, size = 0x1000, scoped, tag = 'scratch operand']
  %s0 = inlined_call_operand.vmem [shape: bf16[16,128], index: 0, kind: input, shape index: {}]
  %s1 = inlined_call_operand.hbm [shape: bf16[128,512], index: 1, kind: input, shape index: {}]
  %s2 = inlined_call_operand.vmem [shape: f32[1,512], index: 2, kind: input, shape index: {}]
  %s3 = inlined_call_operand.hbm [shape: bf16[512,128], index: 3, kind: input, shape index: {}]
  %s4 = inlined_call_operand.vmem [shape: f32[1,128], index: 4, kind: input, shape index: {}]
  %s5 = inlined_call_operand.hbm [shape: f32[16,128], index: 5, kind: output, shape index: {}]
  %s6 = sld [smem:[#allocation0]]
  $region69: #{mlp_forward.1} parent=0
    _
  %s8 = ssub.s32 1, %s6
  %s9 = scalar_select 0, %s8, %s6
  $region1: #{mlp_forward.1} parent=0
    #allocation3 [shape = 'u8[131072]{0}', space=vmem, size = 0x20000, scoped, tag = 'input window, operand 1, single buffered']
    #allocation4 [shape = 's32[2]{0}', space=sflag, size = 0x8, scoped, tag = 'scoped memory for mlp_forward.1']
    #allocation5 [shape = 's32[2]{0}', space=sflag, size = 0x8, scoped, tag = 'scoped memory for mlp_forward.1']
    #allocation6 [shape = 'u8[131072]{0}', space=vmem, size = 0x20000, scoped, tag = 'input window, operand 3, single buffered']
    #allocation7 [shape = 's32[1]{0}', space=sflag, size = 0x4, scoped, tag = 'scoped memory for mlp_forward.1']
    #allocation8 [shape = 'u8[8192]{0}', space=vmem, size = 0x2000, scoped, tag = 'output window, operand 0']
    %10 = vsyncpa [#allocation4], 0
    %11 = vsyncpa [#allocation7], 0
    %12 = vsyncpa [#allocation5], 0
    %s13 = scalar_lea.sflag [#allocation5], 1
    %14 = vsyncpa %s13, 0
    loop: start=0, step=1, limit=4
    $region2: #{mlp_forward.1} parent=1 // loop_pre_header
      _
    $region3: #{mlp_forward.1} parent=1 // loop_header
      %s16 = sphi 0, %s20
      %p17 = scmp.ge.s32.totalorder %s16, 4
      %s23 = sphi 0, %s35
      %s24 = sphi 0, %s31
      %s25 = sphi 0, %s23
      %s26 = sphi 0, %s24
      %s27 = sphi 0, %s25
      %s28 = sphi 0, %s26
      %s38 = sphi 0, %s40
      %s41 = sphi 0, %s38
      %s42 = sphi 0, %s41
      %s58 = sphi 0, %s42
      %s64 = sphi 0, %s66
      %s67 = sphi 0, %s64
      %s68 = sphi 0, %s67
      %s84 = sphi 0, %s68
      %s90 = sphi 0, %s92
      %s93 = sphi 0, %s90
      %s94 = sphi 0, %s93
      %s110 = sphi 0, %s94
      %s116 = sphi 0, %s118
      %s119 = sphi 0, %s116
      %s120 = sphi 0, %s119
      %s136 = sphi 0, %s120
      %s140 = sphi 0, %s140
      %s142 = sphi 0, %s140
      %s143 = sphi 0, %s142
      %s157 = sphi 0, %s143
      %s163 = sphi 0, %s165
      %s166 = sphi 0, %s163
      %s167 = sphi 0, %s166
      %s183 = sphi 0, %s167
    $region4: #{mlp_forward.1} parent=1 // loop_header_branch
      %19 = sbr.rel (%p17) target = $region8
    $region5: #{mlp_forward.1} parent=1 // loop_body
      %s21 = ssub.s32 %s16, 1
      %s22 = ssub.s32 %s16, 2
      %s29 = sadd.s32 1, %s24
      %p30 = scmp.ge.s32.totalorder %s29, 1
      %s31 = scalar_select %p30, 0, %s29
      %s32 = sadd.s32 1, %s23
      %s33 = scalar_select %p30, %s32, %s23
      %p34 = scmp.ge.s32.totalorder %s33, 2
      %s35 = scalar_select %p34, 0, %s33
      %s36 = ssub.s32 %s23, %s35
      %p37 = scmp.eq.s32.totalorder %s36, 0
      %s39 = sadd.s32 %s38, 1
      %s40 = scalar_select %p37, %s38, %s39
      %p43 = pneg %p37
      %p44 = scmp.eq.s32.totalorder %s16, 1
      %p45 = por %p43, %p44
      %p46 = scmp.ne.s32.totalorder %s38, %s41
      %p47 = scmp.eq.s32.totalorder %s16, 0
      %p48 = por %p46, %p47
      %p49 = scmp.ne.s32.totalorder %s38, %s41
      %p50 = scmp.eq.s32.totalorder %s21, 1
      %p51 = por %p49, %p50
      %p52 = scmp.ne.s32.totalorder %s41, %s42
      %p53 = scmp.eq.s32.totalorder %s21, 0
      %p54 = por %p52, %p53
      %p55 = scmp.ne.s32.totalorder %s41, %s42
      %p56 = scmp.eq.s32.totalorder %s22, 1
      %p57 = por %p55, %p56
      %p59 = scmp.ne.s32.totalorder %s42, %s58
      %p60 = scmp.eq.s32.totalorder %s22, 0
      %p61 = por %p59, %p60
      %s62 = ssub.s32 %s24, %s31
      %p63 = scmp.eq.s32.totalorder %s62, 0
      %s65 = sadd.s32 %s64, 1
      %s66 = scalar_select %p63, %s64, %s65
      %p69 = pneg %p63
      %p70 = scmp.eq.s32.totalorder %s16, 1
      %p71 = por %p69, %p70
      %p72 = scmp.ne.s32.totalorder %s64, %s67
      %p73 = scmp.eq.s32.totalorder %s16, 0
      %p74 = por %p72, %p73
      %p75 = scmp.ne.s32.totalorder %s64, %s67
      %p76 = scmp.eq.s32.totalorder %s21, 1
      %p77 = por %p75, %p76
      %p78 = scmp.ne.s32.totalorder %s67, %s68
      %p79 = scmp.eq.s32.totalorder %s21, 0
      %p80 = por %p78, %p79
      %p81 = scmp.ne.s32.totalorder %s67, %s68
      %p82 = scmp.eq.s32.totalorder %s22, 1
      %p83 = por %p81, %p82
      %p85 = scmp.ne.s32.totalorder %s68, %s84
      %p86 = scmp.eq.s32.totalorder %s22, 0
      %p87 = por %p85, %p86
      %s88 = ssub.s32 %s24, %s31
      %p89 = scmp.eq.s32.totalorder %s88, 0
      %s91 = sadd.s32 %s90, 1
      %s92 = scalar_select %p89, %s90, %s91
      %p95 = pneg %p89
      %p96 = scmp.eq.s32.totalorder %s16, 1
      %p97 = por %p95, %p96
      %p98 = scmp.ne.s32.totalorder %s90, %s93
      %p99 = scmp.eq.s32.totalorder %s16, 0
      %p100 = por %p98, %p99
      %p101 = scmp.ne.s32.totalorder %s90, %s93
      %p102 = scmp.eq.s32.totalorder %s21, 1
      %p103 = por %p101, %p102
      %p104 = scmp.ne.s32.totalorder %s93, %s94
      %p105 = scmp.eq.s32.totalorder %s21, 0
      %p106 = por %p104, %p105
      %p107 = scmp.ne.s32.totalorder %s93, %s94
      %p108 = scmp.eq.s32.totalorder %s22, 1
      %p109 = por %p107, %p108
      %p111 = scmp.ne.s32.totalorder %s94, %s110
      %p112 = scmp.eq.s32.totalorder %s22, 0
      %p113 = por %p111, %p112
      %s114 = ssub.s32 %s24, %s31
      %p115 = scmp.eq.s32.totalorder %s114, 0
      %s117 = sadd.s32 %s116, 1
      %s118 = scalar_select %p115, %s116, %s117
      %p121 = pneg %p115
      %p122 = scmp.eq.s32.totalorder %s16, 1
      %p123 = por %p121, %p122
      %p124 = scmp.ne.s32.totalorder %s116, %s119
      %p125 = scmp.eq.s32.totalorder %s16, 0
      %p126 = por %p124, %p125
      %p127 = scmp.ne.s32.totalorder %s116, %s119
      %p128 = scmp.eq.s32.totalorder %s21, 1
      %p129 = por %p127, %p128
      %p130 = scmp.ne.s32.totalorder %s119, %s120
      %p131 = scmp.eq.s32.totalorder %s21, 0
      %p132 = por %p130, %p131
      %p133 = scmp.ne.s32.totalorder %s119, %s120
      %p134 = scmp.eq.s32.totalorder %s22, 1
      %p135 = por %p133, %p134
      %p137 = scmp.ne.s32.totalorder %s120, %s136
      %p138 = scmp.eq.s32.totalorder %s22, 0
      %p139 = por %p137, %p138
      %s141 = sadd.s32 %s140, 1
      %p144 = scmp.eq.s32.totalorder %s16, 1
      %p145 = scmp.ne.s32.totalorder %s140, %s142
      %p146 = scmp.eq.s32.totalorder %s16, 0
      %p147 = por %p145, %p146
      %p148 = scmp.ne.s32.totalorder %s140, %s142
      %p149 = scmp.eq.s32.totalorder %s21, 1
      %p150 = por %p148, %p149
      %p151 = scmp.ne.s32.totalorder %s142, %s143
      %p152 = scmp.eq.s32.totalorder %s21, 0
      %p153 = por %p151, %p152
      %p154 = scmp.ne.s32.totalorder %s142, %s143
      %p155 = scmp.eq.s32.totalorder %s22, 1
      %p156 = por %p154, %p155
      %p158 = scmp.ne.s32.totalorder %s143, %s157
      %p159 = scmp.eq.s32.totalorder %s22, 0
      %p160 = por %p158, %p159
      %s161 = ssub.s32 %s23, %s35
      %p162 = scmp.eq.s32.totalorder %s161, 0
      %s164 = sadd.s32 %s163, 1
      %s165 = scalar_select %p162, %s163, %s164
      %p168 = pneg %p162
      %p169 = scmp.eq.s32.totalorder %s16, 1
      %p170 = por %p168, %p169
      %p171 = scmp.ne.s32.totalorder %s163, %s166
      %p172 = scmp.eq.s32.totalorder %s16, 0
      %p173 = por %p171, %p172
      %p174 = scmp.ne.s32.totalorder %s163, %s166
      %p175 = scmp.eq.s32.totalorder %s21, 1
      %p176 = por %p174, %p175
      %p177 = scmp.ne.s32.totalorder %s166, %s167
      %p178 = scmp.eq.s32.totalorder %s21, 0
      %p179 = por %p177, %p178
      %p180 = scmp.ne.s32.totalorder %s166, %s167
      %p181 = scmp.eq.s32.totalorder %s22, 1
      %p182 = por %p180, %p181
      %p184 = scmp.ne.s32.totalorder %s167, %s183
      %p185 = scmp.eq.s32.totalorder %s22, 0
      %p186 = por %p184, %p185
      %p187 = scmp.le.s32.totalorder 1, %s16
      %p188 = scmp.lt.s32.totalorder %s16, 3
      %p189 = pnand %p187, %p188
      %p190 = pneg %p189
      // Predicated region
      $region9: #{mlp_forward.1} parent=5 // pred_check
        _
      $region10: #{mlp_forward.1} parent=5 // pred_check_branch
        %192 = sbr.rel (%p189) target = $region12
      $region11: #{mlp_forward.1} parent=5 // pred_region
        %s193 = ssub.s32 %s16, 1
        // Predicated region
        $region13: #{mlp_forward.1} parent=11 // pred_check
          %p194 = pneg %p80
        $region14: #{mlp_forward.1} parent=11 // pred_check_branch
          %196 = sbr.rel (%p194) target = $region16
        $region15: #{mlp_forward.1} parent=11 // pred_region
          %s197 = smul.u32 4, %s26
          %199 = vsyncadd [#allocation4], 0
          %s200 = smul.addr %s197, 4
          %s201 = scalar_lea.hbm %s1, %s200
          %s202 = sshll.u32 %s201, 4
          %s203 = int_to_ptr.hbm [resolvable:$true] %s202
          %s204 = sshll.u32 [#allocation3], 4
          %s205 = int_to_ptr.vmem [resolvable:$true] %s204
          %210 = dma.hbm_to_vmem [thread:$0]  %s203, 4096, %s205, [#allocation4], 256, 256, 16
        $region16: #{mlp_forward.1} parent=11 // pred_fallthru
          _
        // Predicated region
        $region17: #{mlp_forward.1} parent=11 // pred_check
          %p211 = pneg %p106
        $region18: #{mlp_forward.1} parent=11 // pred_check_branch
          %213 = sbr.rel (%p211) target = $region20
        $region19: #{mlp_forward.1} parent=11 // pred_region
          %s214 = smul.u32 4, %s26
          %p215 = scmp.lt.s32.totalorder %s214, 3
          %s216 = scalar_select %p215, %s214, 3
          %s217 = scalar_lea.vmem %s2, %s216
          %s218 = smul.u32 4, %s26
        $region20: #{mlp_forward.1} parent=11 // pred_fallthru
          _
        // Predicated region
        $region21: #{mlp_forward.1} parent=11 // pred_check
          %p219 = pneg %p132
        $region22: #{mlp_forward.1} parent=11 // pred_check_branch
          %221 = sbr.rel (%p219) target = $region24
        $region23: #{mlp_forward.1} parent=11 // pred_region
          %s222 = smul.u32 64, %s26
          %224 = vsyncadd [#allocation7], 0
          %s225 = smul.addr %s222, 4
          %s226 = scalar_lea.hbm %s3, %s225
          %s227 = sshll.u32 %s226, 4
          %s228 = int_to_ptr.hbm [resolvable:$true] %s227
          %s229 = sshll.u32 [#allocation6], 4
          %s230 = int_to_ptr.vmem [resolvable:$true] %s229
          %235 = dma.hbm_to_vmem [thread:$0]  %s228, 4096, %s230, [#allocation7], 64, 64, 4
        $region24: #{mlp_forward.1} parent=11 // pred_fallthru
          _
        // Predicated region
        $region25: #{mlp_forward.1} parent=11 // pred_check
          %p236 = pneg %p153
        $region26: #{mlp_forward.1} parent=11 // pred_check_branch
          %238 = sbr.rel (%p236) target = $region28
        $region27: #{mlp_forward.1} parent=11 // pred_region
          _
        $region28: #{mlp_forward.1} parent=11 // pred_fallthru
          _
      $region12: #{mlp_forward.1} parent=5 // pred_fallthru
        _
      %p239 = scmp.lt.s32.totalorder %s16, 2
      // Predicated region
      $region29: #{mlp_forward.1} parent=5 // pred_check
        %p240 = pneg %p239
      $region30: #{mlp_forward.1} parent=5 // pred_check_branch
        %242 = sbr.rel (%p240) target = $region32
      $region31: #{mlp_forward.1} parent=5 // pred_region
        // Predicated region
        $region33: #{mlp_forward.1} parent=31 // pred_check
          %p243 = pneg %p48
        $region34: #{mlp_forward.1} parent=31 // pred_check_branch
          %245 = sbr.rel (%p243) target = $region36
        $region35: #{mlp_forward.1} parent=31 // pred_region
          %p246 = scmp.lt.s32.totalorder %s23, 1
          %s247 = scalar_select %p246, %s23, 1
          %s248 = smul.addr %s247, 4
          %s249 = scalar_lea.vmem %s0, %s248
        $region36: #{mlp_forward.1} parent=31 // pred_fallthru
          _
      $region32: #{mlp_forward.1} parent=5 // pred_fallthru
        _
      %p250 = scmp.le.s32.totalorder 1, %s16
      %p251 = scmp.lt.s32.totalorder %s16, 3
      %p252 = pnand %p250, %p251
      %p253 = pneg %p252
      // Predicated region
      $region37: #{mlp_forward.1} parent=5 // pred_check
        _
      $region38: #{mlp_forward.1} parent=5 // pred_check_branch
        %255 = sbr.rel (%p252) target = $region40
      $region39: #{mlp_forward.1} parent=5 // pred_region
        %s256 = ssub.s32 %s16, 1
        // Predicated region
        $region41: #{mlp_forward.1} parent=39 // pred_check
          %p257 = pneg %p80
        $region42: #{mlp_forward.1} parent=39 // pred_check_branch
          %259 = sbr.rel (%p257) target = $region44
        $region43: #{mlp_forward.1} parent=39 // pred_region
          %261 = dma.done [#allocation4], 4096
        $region44: #{mlp_forward.1} parent=39 // pred_fallthru
          _
        // Predicated region
        $region45: #{mlp_forward.1} parent=39 // pred_check
          %p262 = pneg %p132
        $region46: #{mlp_forward.1} parent=39 // pred_check_branch
          %264 = sbr.rel (%p262) target = $region48
        $region47: #{mlp_forward.1} parent=39 // pred_region
          %266 = dma.done [#allocation7], 4096
        $region48: #{mlp_forward.1} parent=39 // pred_fallthru
          _
        %p267 = scmp.lt.s32.totalorder %s25, 1
        %s268 = scalar_select %p267, %s25, 1
        %s269 = smul.addr %s268, 4
        %s270 = scalar_lea.vmem %s0, %s269
        %p271 = pneg %p54
        %p272 = pneg %p51
        %p273 = pneg %p80
        %p274 = pneg %p77
        %s275 = smul.u32 4, %s26
        %p276 = scmp.lt.s32.totalorder %s275, 3
        %s277 = scalar_select %p276, %s275, 3
        %s278 = scalar_lea.vmem %s2, %s277
        %p279 = pneg %p106
        %p280 = pneg %p103
        %p281 = pneg %p132
        %p282 = pneg %p129
        %p283 = pneg %p153
        %p284 = pneg %p150
        %p285 = pneg %p179
        %p286 = pneg %p176
        %s287 = sand.u32 %s166, 1
        %s288 = scalar_lea.sflag [#allocation5], %s287
        %s289 = sand.u32 %s166, 1
        %s290 = smul.addr %s289, 8
        %s291 = scalar_lea.vmem [#allocation8], %s290
        %p292 = scmp.lt.s32.totalorder %s25, 1
        %s293 = scalar_select %p292, %s25, 1
        %s294 = smul.addr %s293, 4
        %s295 = scalar_lea.vmem %s0, %s294
        %s296 = smul.u32 4, %s26
        %s297 = smul.u32 4, %s26
        %p298 = scmp.lt.s32.totalorder %s297, 3
        %s299 = scalar_select %p298, %s297, 3
        %s300 = scalar_lea.vmem %s2, %s299
        %s301 = smul.u32 4, %s26
        %s302 = smul.u32 64, %s26
        %p303 = scmp.eq.s32.totalorder %s26, 0
        // Predicated region
        $region49: #{mlp_forward.1} parent=39 // pred_check
          %p304 = pneg %p303
        $region50: #{mlp_forward.1} parent=39 // pred_check_branch
          %306 = sbr.rel (%p304) target = $region52
        $region51: #{mlp_forward.1} parent=39 // pred_region
          %307 = vst [vmem:[#allocation2] sm:$0xff] 0.0
        $region52: #{mlp_forward.1} parent=39 // pred_fallthru
          _
        %v308 = vld [vmem:[%s295] sm:$0xf]
        %v309 = vld [vmem:[#allocation3] sm:$0xff]
        %v310 = vld [vmem:[#allocation3 + $0x8] sm:$0xff]
        %v311 = vld [vmem:[#allocation3 + $0x10] sm:$0xff]
        %v312 = vld [vmem:[#allocation3 + $0x18] sm:$0xff]
        %v313 = vld [vmem:[#allocation3 + $0x20] sm:$0xff]
        %v314 = vld [vmem:[#allocation3 + $0x28] sm:$0xff]
        %v315 = vld [vmem:[#allocation3 + $0x30] sm:$0xff]
        %v316 = vld [vmem:[#allocation3 + $0x38] sm:$0xff]
        %v317 = vld [vmem:[#allocation3 + $0x40] sm:$0xff]
        %v318 = vld [vmem:[#allocation3 + $0x48] sm:$0xff]
        %v319 = vld [vmem:[#allocation3 + $0x50] sm:$0xff]
        %v320 = vld [vmem:[#allocation3 + $0x58] sm:$0xff]
        %v321 = vld [vmem:[#allocation3 + $0x60] sm:$0xff]
        %v322 = vld [vmem:[#allocation3 + $0x68] sm:$0xff]
        %v323 = vld [vmem:[#allocation3 + $0x70] sm:$0xff]
        %v324 = vld [vmem:[#allocation3 + $0x78] sm:$0xff]
        %v325 = vld [vmem:[#allocation3 + $0x80] sm:$0xff]
        %v326 = vld [vmem:[#allocation3 + $0x88] sm:$0xff]
        %v327 = vld [vmem:[#allocation3 + $0x90] sm:$0xff]
        %v328 = vld [vmem:[#allocation3 + $0x98] sm:$0xff]
        %v329 = vld [vmem:[#allocation3 + $0xa0] sm:$0xff]
        %v330 = vld [vmem:[#allocation3 + $0xa8] sm:$0xff]
        %v331 = vld [vmem:[#allocation3 + $0xb0] sm:$0xff]
        %v332 = vld [vmem:[#allocation3 + $0xb8] sm:$0xff]
        %v333 = vld [vmem:[#allocation3 + $0xc0] sm:$0xff]
        %v334 = vld [vmem:[#allocation3 + $0xc8] sm:$0xff]
        %v335 = vld [vmem:[#allocation3 + $0xd0] sm:$0xff]
        %v336 = vld [vmem:[#allocation3 + $0xd8] sm:$0xff]
        %v337 = vld [vmem:[#allocation3 + $0xe0] sm:$0xff]
        %v338 = vld [vmem:[#allocation3 + $0xe8] sm:$0xff]
        %v339 = vld [vmem:[#allocation3 + $0xf0] sm:$0xff]
        %v340 = vld [vmem:[#allocation3 + $0xf8] sm:$0xff]
        %v341 = vld [vmem:[%s300] sm:$0xf]
        %v343 = vperm.slane %v341, 0
        %v344 = vperm.slane %v341, 1
        %v345 = vperm.slane %v341, 2
        %v346 = vperm.slane %v341, 3
        %v383 = vunpack.c.l.b16 %v309
        %v384 = vunpack.c.h.b16 %v309
        %v385 = vunpack.c.l.b16 %v310
        %v386 = vunpack.c.h.b16 %v310
        %v387 = vunpack.c.l.b16 %v311
        %v388 = vunpack.c.h.b16 %v311
        %v389 = vunpack.c.l.b16 %v312
        %v390 = vunpack.c.h.b16 %v312
        %v391 = vunpack.c.l.b16 %v313
        %v392 = vunpack.c.h.b16 %v313
        %v393 = vunpack.c.l.b16 %v314
        %v394 = vunpack.c.h.b16 %v314
        %v395 = vunpack.c.l.b16 %v315
        %v396 = vunpack.c.h.b16 %v315
        %v397 = vunpack.c.l.b16 %v316
        %v398 = vunpack.c.h.b16 %v316
        %v399 = vunpack.c.l.b16 %v317
        %v400 = vunpack.c.h.b16 %v317
        %v401 = vunpack.c.l.b16 %v318
        %v402 = vunpack.c.h.b16 %v318
        %v403 = vunpack.c.l.b16 %v319
        %v404 = vunpack.c.h.b16 %v319
        %v405 = vunpack.c.l.b16 %v320
        %v406 = vunpack.c.h.b16 %v320
        %v407 = vunpack.c.l.b16 %v321
        %v408 = vunpack.c.h.b16 %v321
        %v409 = vunpack.c.l.b16 %v322
        %v410 = vunpack.c.h.b16 %v322
        %v411 = vunpack.c.l.b16 %v323
        %v412 = vunpack.c.h.b16 %v323
        %v413 = vunpack.c.l.b16 %v324
        %v414 = vunpack.c.h.b16 %v324
        %v415 = vunpack.c.l.b16 %v325
        %v416 = vunpack.c.h.b16 %v325
        %v417 = vunpack.c.l.b16 %v326
        %v418 = vunpack.c.h.b16 %v326
        %v419 = vunpack.c.l.b16 %v327
        %v420 = vunpack.c.h.b16 %v327
        %v421 = vunpack.c.l.b16 %v328
        %v422 = vunpack.c.h.b16 %v328
        %v423 = vunpack.c.l.b16 %v329
        %v424 = vunpack.c.h.b16 %v329
        %v425 = vunpack.c.l.b16 %v330
        %v426 = vunpack.c.h.b16 %v330
        %v427 = vunpack.c.l.b16 %v331
        %v428 = vunpack.c.h.b16 %v331
        %v429 = vunpack.c.l.b16 %v332
        %v430 = vunpack.c.h.b16 %v332
        %v431 = vunpack.c.l.b16 %v333
        %v432 = vunpack.c.h.b16 %v333
        %v433 = vunpack.c.l.b16 %v334
        %v434 = vunpack.c.h.b16 %v334
        %v435 = vunpack.c.l.b16 %v335
        %v436 = vunpack.c.h.b16 %v335
        %v437 = vunpack.c.l.b16 %v336
        %v438 = vunpack.c.h.b16 %v336
        %v439 = vunpack.c.l.b16 %v337
        %v440 = vunpack.c.h.b16 %v337
        %v441 = vunpack.c.l.b16 %v338
        %v442 = vunpack.c.h.b16 %v338
        %v443 = vunpack.c.l.b16 %v339
        %v444 = vunpack.c.h.b16 %v339
        %v445 = vunpack.c.l.b16 %v340
        %v446 = vunpack.c.h.b16 %v340
        %v447 = vpack.c.b16 %v387, %v383
        %v448 = vpack.c.b16 %v388, %v384
        %v449 = vpack.c.b16 %v389, %v385
        %v450 = vpack.c.b16 %v390, %v386
        %v451 = vpack.c.b16 %v395, %v391
        %v452 = vpack.c.b16 %v396, %v392
        %v453 = vpack.c.b16 %v397, %v393
        %v454 = vpack.c.b16 %v398, %v394
        %v455 = vpack.c.b16 %v403, %v399
        %v456 = vpack.c.b16 %v404, %v400
        %v457 = vpack.c.b16 %v405, %v401
        %v458 = vpack.c.b16 %v406, %v402
        %v459 = vpack.c.b16 %v411, %v407
        %v460 = vpack.c.b16 %v412, %v408
        %v461 = vpack.c.b16 %v413, %v409
        %v462 = vpack.c.b16 %v414, %v410
        %v463 = vpack.c.b16 %v419, %v415
        %v464 = vpack.c.b16 %v420, %v416
        %v465 = vpack.c.b16 %v421, %v417
        %v466 = vpack.c.b16 %v422, %v418
        %v467 = vpack.c.b16 %v427, %v423
        %v468 = vpack.c.b16 %v428, %v424
        %v469 = vpack.c.b16 %v429, %v425
        %v470 = vpack.c.b16 %v430, %v426
        %v471 = vpack.c.b16 %v435, %v431
        %v472 = vpack.c.b16 %v436, %v432
        %v473 = vpack.c.b16 %v437, %v433
        %v474 = vpack.c.b16 %v438, %v434
        %v475 = vpack.c.b16 %v443, %v439
        %v476 = vpack.c.b16 %v444, %v440
        %v477 = vpack.c.b16 %v445, %v441
        %v478 = vpack.c.b16 %v446, %v442
        %511 = vmatpush.bf16.msra.mxu0 %v475
        %512 = vmatpush.bf16.msra.mxu0 %v471
        %513 = vmatpush.bf16.msra.mxu0 %v467
        %514 = vmatpush.bf16.msra.mxu0 %v463
        %515 = vmatpush.bf16.msra.mxu0 %v459
        %516 = vmatpush.bf16.msra.mxu0 %v455
        %517 = vmatpush.bf16.msra.mxu0 %v451
        %518 = vmatpush.bf16.msra.mxu0 %v447
        %519 = vmatmul.bf16.gmra.mxu0 %v308
        %v520 = vpop.f32.mrf.mxu0
        %v521 = vadd.f32 %v343, %v520
        %v522 = vpop.f32.mrf.mxu0
        %523 = vdwg.mxu0
        %524 = vmatpush.bf16.msra.mxu0 %v476
        %525 = vmatpush.bf16.msra.mxu0 %v472
        %526 = vmatpush.bf16.msra.mxu0 %v468
        %527 = vmatpush.bf16.msra.mxu0 %v464
        %528 = vmatpush.bf16.msra.mxu0 %v460
        %529 = vmatpush.bf16.msra.mxu0 %v456
        %530 = vmatpush.bf16.msra.mxu0 %v452
        %531 = vmatpush.bf16.msra.mxu0 %v448
        %532 = vmatmul.bf16.gmra.mxu0 %v308
        %v533 = vpop.f32.mrf.mxu0
        %v534 = vadd.f32 %v344, %v533
        %v535 = vpop.f32.mrf.mxu0
        %536 = vdwg.mxu0
        %537 = vmatpush.bf16.msra.mxu0 %v477
        %538 = vmatpush.bf16.msra.mxu0 %v473
        %539 = vmatpush.bf16.msra.mxu0 %v469
        %540 = vmatpush.bf16.msra.mxu0 %v465
        %541 = vmatpush.bf16.msra.mxu0 %v461
        %542 = vmatpush.bf16.msra.mxu0 %v457
        %543 = vmatpush.bf16.msra.mxu0 %v453
        %544 = vmatpush.bf16.msra.mxu0 %v449
        %545 = vmatmul.bf16.gmra.mxu0 %v308
        %v546 = vpop.f32.mrf.mxu0
        %v547 = vadd.f32 %v345, %v546
        %v548 = vpop.f32.mrf.mxu0
        %549 = vdwg.mxu0
        %550 = vmatpush.bf16.msra.mxu0 %v478
        %551 = vmatpush.bf16.msra.mxu0 %v474
        %552 = vmatpush.bf16.msra.mxu0 %v470
        %553 = vmatpush.bf16.msra.mxu0 %v466
        %554 = vmatpush.bf16.msra.mxu0 %v462
        %555 = vmatpush.bf16.msra.mxu0 %v458
        %556 = vmatpush.bf16.msra.mxu0 %v454
        %557 = vmatpush.bf16.msra.mxu0 %v450
        %558 = vmatmul.bf16.gmra.mxu0 %v308
        %v559 = vpop.f32.mrf.mxu0
        %v560 = vadd.f32 %v346, %v559
        %v561 = vpop.f32.mrf.mxu0
        %562 = vdwg.mxu0
        %v563 = vmul.f32 %v521, 0.5
        %v564 = vmul.f32 %v534, 0.5
        %v565 = vmul.f32 %v547, 0.5
        %v566 = vmul.f32 %v560, 0.5
        %v567 = vmul.f32 %v521, 0.70710677
        %v568 = vmul.f32 %v534, 0.70710677
        %v569 = vmul.f32 %v547, 0.70710677
        %v570 = vmul.f32 %v560, 0.70710677
        %v571 = vand.u32 2147483647, %v567
        %v572 = vand.u32 2147483647, %v568
        %v573 = vand.u32 2147483647, %v569
        %v574 = vand.u32 2147483647, %v570
        %v575 = vmul.f32 %v571, 0.3275911
        %v576 = vmul.f32 %v572, 0.3275911
        %v577 = vmul.f32 %v573, 0.3275911
        %v578 = vmul.f32 %v574, 0.3275911
        %v579 = vadd.f32 %v575, 1.0
        %v580 = vadd.f32 %v576, 1.0
        %v581 = vadd.f32 %v577, 1.0
        %v582 = vadd.f32 %v578, 1.0
        %v583 = vrcp.pop %v579
        %v584 = vrcp.pop %v580
        %v585 = vrcp.pop %v581
        %v586 = vrcp.pop %v582
        %v587 = vmul.f32 %v583, 1.0614054
        %v588 = vmul.f32 %v584, 1.0614054
        %v589 = vmul.f32 %v585, 1.0614054
        %v590 = vmul.f32 %v586, 1.0614054
        %v591 = vadd.f32 %v587, -1.4531521
        %v592 = vadd.f32 %v588, -1.4531521
        %v593 = vadd.f32 %v589, -1.4531521
        %v594 = vadd.f32 %v590, -1.4531521
        %v595 = vmul.f32 %v591, %v583
        %v596 = vmul.f32 %v592, %v584
        %v597 = vmul.f32 %v593, %v585
        %v598 = vmul.f32 %v594, %v586
        %v599 = vadd.f32 %v595, 1.4214138
        %v600 = vadd.f32 %v596, 1.4214138
        %v601 = vadd.f32 %v597, 1.4214138
        %v602 = vadd.f32 %v598, 1.4214138
        %v603 = vmul.f32 %v599, %v583
        %v604 = vmul.f32 %v600, %v584
        %v605 = vmul.f32 %v601, %v585
        %v606 = vmul.f32 %v602, %v586
        %v607 = vadd.f32 %v603, -0.28449672
        %v608 = vadd.f32 %v604, -0.28449672
        %v609 = vadd.f32 %v605, -0.28449672
        %v610 = vadd.f32 %v606, -0.28449672
        %v611 = vmul.f32 %v607, %v583
        %v612 = vmul.f32 %v608, %v584
        %v613 = vmul.f32 %v609, %v585
        %v614 = vmul.f32 %v610, %v586
        %v615 = vadd.f32 %v611, 0.2548296
        %v616 = vadd.f32 %v612, 0.2548296
        %v617 = vadd.f32 %v613, 0.2548296
        %v618 = vadd.f32 %v614, 0.2548296
        %v619 = vmul.f32 %v615, %v583
        %v620 = vmul.f32 %v616, %v584
        %v621 = vmul.f32 %v617, %v585
        %v622 = vmul.f32 %v618, %v586
        %v623 = vsub.f32 0.0, %v571
        %v624 = vsub.f32 0.0, %v572
        %v625 = vsub.f32 0.0, %v573
        %v626 = vsub.f32 0.0, %v574
        %v627 = vmul.f32 %v623, %v571
        %v628 = vmul.f32 %v624, %v572
        %v629 = vmul.f32 %v625, %v573
        %v630 = vmul.f32 %v626, %v574
        %v631 = vmul.f32 %v627, 1.442695
        %v632 = vpow.pop %v631
        %v633 = vmul.f32 %v628, 1.442695
        %v634 = vpow.pop %v633
        %v635 = vmul.f32 %v629, 1.442695
        %v636 = vpow.pop %v635
        %v637 = vmul.f32 %v630, 1.442695
        %v638 = vpow.pop %v637
        %v639 = vmul.f32 %v619, %v632
        %v640 = vmul.f32 %v620, %v634
        %v641 = vmul.f32 %v621, %v636
        %v642 = vmul.f32 %v622, %v638
        %v643 = vsub.f32 1.0, %v639
        %v644 = vsub.f32 1.0, %v640
        %v645 = vsub.f32 1.0, %v641
        %v646 = vsub.f32 1.0, %v642
        %vm647 = vcmp.ge.f32.partialorder %v567, 0.0
        %vm648 = vcmp.ge.f32.partialorder %v568, 0.0
        %vm649 = vcmp.ge.f32.partialorder %v569, 0.0
        %vm650 = vcmp.ge.f32.partialorder %v570, 0.0
        %v651 = vsub.f32 0.0, %v643
        %v652 = vsub.f32 0.0, %v644
        %v653 = vsub.f32 0.0, %v645
        %v654 = vsub.f32 0.0, %v646
        %v655 = vsel %vm647, %v643, %v651
        %v656 = vsel %vm648, %v644, %v652
        %v657 = vsel %vm649, %v645, %v653
        %v658 = vsel %vm650, %v646, %v654
        %v659 = vadd.f32 %v655, 1.0
        %v660 = vadd.f32 %v656, 1.0
        %v661 = vadd.f32 %v657, 1.0
        %v662 = vadd.f32 %v658, 1.0
        %v663 = vmul.f32 %v563, %v659
        %v664 = vmul.f32 %v564, %v660
        %v665 = vmul.f32 %v565, %v661
        %v666 = vmul.f32 %v566, %v662
        %v667 = vld [vmem:[#allocation2] sm:$0xff]
        %v668 = vpack.c.bf16 %v663, %v663
        %v669 = vpack.c.bf16 %v664, %v664
        %v670 = vpack.c.bf16 %v665, %v665
        %v671 = vpack.c.bf16 %v666, %v666
        %v672 = vld [vmem:[#allocation6] sm:$0xf]
        %v673 = vld [vmem:[#allocation6 + $0x4] sm:$0xf]
        %v674 = vld [vmem:[#allocation6 + $0x8] sm:$0xf]
        %v675 = vld [vmem:[#allocation6 + $0xc] sm:$0xf]
        %v676 = vld [vmem:[#allocation6 + $0x10] sm:$0xf]
        %v677 = vld [vmem:[#allocation6 + $0x14] sm:$0xf]
        %v678 = vld [vmem:[#allocation6 + $0x18] sm:$0xf]
        %v679 = vld [vmem:[#allocation6 + $0x1c] sm:$0xf]
        %v680 = vld [vmem:[#allocation6 + $0x20] sm:$0xf]
        %v681 = vld [vmem:[#allocation6 + $0x24] sm:$0xf]
        %v682 = vld [vmem:[#allocation6 + $0x28] sm:$0xf]
        %v683 = vld [vmem:[#allocation6 + $0x2c] sm:$0xf]
        %v684 = vld [vmem:[#allocation6 + $0x30] sm:$0xf]
        %v685 = vld [vmem:[#allocation6 + $0x34] sm:$0xf]
        %v686 = vld [vmem:[#allocation6 + $0x38] sm:$0xf]
        %v687 = vld [vmem:[#allocation6 + $0x3c] sm:$0xf]
        %v688 = vld [vmem:[#allocation6 + $0x40] sm:$0xf]
        %v689 = vld [vmem:[#allocation6 + $0x44] sm:$0xf]
        %v690 = vld [vmem:[#allocation6 + $0x48] sm:$0xf]
        %v691 = vld [vmem:[#allocation6 + $0x4c] sm:$0xf]
        %v692 = vld [vmem:[#allocation6 + $0x50] sm:$0xf]
        %v693 = vld [vmem:[#allocation6 + $0x54] sm:$0xf]
        %v694 = vld [vmem:[#allocation6 + $0x58] sm:$0xf]
        %v695 = vld [vmem:[#allocation6 + $0x5c] sm:$0xf]
        %v696 = vld [vmem:[#allocation6 + $0x60] sm:$0xf]
        %v697 = vld [vmem:[#allocation6 + $0x64] sm:$0xf]
        %v698 = vld [vmem:[#allocation6 + $0x68] sm:$0xf]
        %v699 = vld [vmem:[#allocation6 + $0x6c] sm:$0xf]
        %v700 = vld [vmem:[#allocation6 + $0x70] sm:$0xf]
        %v701 = vld [vmem:[#allocation6 + $0x74] sm:$0xf]
        %v702 = vld [vmem:[#allocation6 + $0x78] sm:$0xf]
        %v703 = vld [vmem:[#allocation6 + $0x7c] sm:$0xf]
        %v704 = vld [vmem:[#allocation6 + $0x80] sm:$0xf]
        %v705 = vld [vmem:[#allocation6 + $0x84] sm:$0xf]
        %v706 = vld [vmem:[#allocation6 + $0x88] sm:$0xf]
        %v707 = vld [vmem:[#allocation6 + $0x8c] sm:$0xf]
        %v708 = vld [vmem:[#allocation6 + $0x90] sm:$0xf]
        %v709 = vld [vmem:[#allocation6 + $0x94] sm:$0xf]
        %v710 = vld [vmem:[#allocation6 + $0x98] sm:$0xf]
        %v711 = vld [vmem:[#allocation6 + $0x9c] sm:$0xf]
        %v712 = vld [vmem:[#allocation6 + $0xa0] sm:$0xf]
        %v713 = vld [vmem:[#allocation6 + $0xa4] sm:$0xf]
        %v714 = vld [vmem:[#allocation6 + $0xa8] sm:$0xf]
        %v715 = vld [vmem:[#allocation6 + $0xac] sm:$0xf]
        %v716 = vld [vmem:[#allocation6 + $0xb0] sm:$0xf]
        %v717 = vld [vmem:[#allocation6 + $0xb4] sm:$0xf]
        %v718 = vld [vmem:[#allocation6 + $0xb8] sm:$0xf]
        %v719 = vld [vmem:[#allocation6 + $0xbc] sm:$0xf]
        %v720 = vld [vmem:[#allocation6 + $0xc0] sm:$0xf]
        %v721 = vld [vmem:[#allocation6 + $0xc4] sm:$0xf]
        %v722 = vld [vmem:[#allocation6 + $0xc8] sm:$0xf]
        %v723 = vld [vmem:[#allocation6 + $0xcc] sm:$0xf]
        %v724 = vld [vmem:[#allocation6 + $0xd0] sm:$0xf]
        %v725 = vld [vmem:[#allocation6 + $0xd4] sm:$0xf]
        %v726 = vld [vmem:[#allocation6 + $0xd8] sm:$0xf]
        %v727 = vld [vmem:[#allocation6 + $0xdc] sm:$0xf]
        %v728 = vld [vmem:[#allocation6 + $0xe0] sm:$0xf]
        %v729 = vld [vmem:[#allocation6 + $0xe4] sm:$0xf]
        %v730 = vld [vmem:[#allocation6 + $0xe8] sm:$0xf]
        %v731 = vld [vmem:[#allocation6 + $0xec] sm:$0xf]
        %v732 = vld [vmem:[#allocation6 + $0xf0] sm:$0xf]
        %v733 = vld [vmem:[#allocation6 + $0xf4] sm:$0xf]
        %v734 = vld [vmem:[#allocation6 + $0xf8] sm:$0xf]
        %v735 = vld [vmem:[#allocation6 + $0xfc] sm:$0xf]
        %v800 = vunpack.c.l.b16 %v672
        %v801 = vunpack.c.l.b16 %v673
        %v802 = vunpack.c.l.b16 %v674
        %v803 = vunpack.c.l.b16 %v675
        %v804 = vunpack.c.l.b16 %v676
        %v805 = vunpack.c.l.b16 %v677
        %v806 = vunpack.c.l.b16 %v678
        %v807 = vunpack.c.l.b16 %v679
        %v808 = vunpack.c.l.b16 %v680
        %v809 = vunpack.c.l.b16 %v681
        %v810 = vunpack.c.l.b16 %v682
        %v811 = vunpack.c.l.b16 %v683
        %v812 = vunpack.c.l.b16 %v684
        %v813 = vunpack.c.l.b16 %v685
        %v814 = vunpack.c.l.b16 %v686
        %v815 = vunpack.c.l.b16 %v687
        %v816 = vunpack.c.l.b16 %v688
        %v817 = vunpack.c.l.b16 %v689
        %v818 = vunpack.c.l.b16 %v690
        %v819 = vunpack.c.l.b16 %v691
        %v820 = vunpack.c.l.b16 %v692
        %v821 = vunpack.c.l.b16 %v693
        %v822 = vunpack.c.l.b16 %v694
        %v823 = vunpack.c.l.b16 %v695
        %v824 = vunpack.c.l.b16 %v696
        %v825 = vunpack.c.l.b16 %v697
        %v826 = vunpack.c.l.b16 %v698
        %v827 = vunpack.c.l.b16 %v699
        %v828 = vunpack.c.l.b16 %v700
        %v829 = vunpack.c.l.b16 %v701
        %v830 = vunpack.c.l.b16 %v702
        %v831 = vunpack.c.l.b16 %v703
        %v832 = vunpack.c.l.b16 %v704
        %v833 = vunpack.c.l.b16 %v705
        %v834 = vunpack.c.l.b16 %v706
        %v835 = vunpack.c.l.b16 %v707
        %v836 = vunpack.c.l.b16 %v708
        %v837 = vunpack.c.l.b16 %v709
        %v838 = vunpack.c.l.b16 %v710
        %v839 = vunpack.c.l.b16 %v711
        %v840 = vunpack.c.l.b16 %v712
        %v841 = vunpack.c.l.b16 %v713
        %v842 = vunpack.c.l.b16 %v714
        %v843 = vunpack.c.l.b16 %v715
        %v844 = vunpack.c.l.b16 %v716
        %v845 = vunpack.c.l.b16 %v717
        %v846 = vunpack.c.l.b16 %v718
        %v847 = vunpack.c.l.b16 %v719
        %v848 = vunpack.c.l.b16 %v720
        %v849 = vunpack.c.l.b16 %v721
        %v850 = vunpack.c.l.b16 %v722
        %v851 = vunpack.c.l.b16 %v723
        %v852 = vunpack.c.l.b16 %v724
        %v853 = vunpack.c.l.b16 %v725
        %v854 = vunpack.c.l.b16 %v726
        %v855 = vunpack.c.l.b16 %v727
        %v856 = vunpack.c.l.b16 %v728
        %v857 = vunpack.c.l.b16 %v729
        %v858 = vunpack.c.l.b16 %v730
        %v859 = vunpack.c.l.b16 %v731
        %v860 = vunpack.c.l.b16 %v732
        %v861 = vunpack.c.l.b16 %v733
        %v862 = vunpack.c.l.b16 %v734
        %v863 = vunpack.c.l.b16 %v735
        %v864 = vpack.c.b16 %v801, %v800
        %v865 = vpack.c.b16 %v803, %v802
        %v866 = vpack.c.b16 %v805, %v804
        %v867 = vpack.c.b16 %v807, %v806
        %v868 = vpack.c.b16 %v809, %v808
        %v869 = vpack.c.b16 %v811, %v810
        %v870 = vpack.c.b16 %v813, %v812
        %v871 = vpack.c.b16 %v815, %v814
        %v872 = vpack.c.b16 %v817, %v816
        %v873 = vpack.c.b16 %v819, %v818
        %v874 = vpack.c.b16 %v821, %v820
        %v875 = vpack.c.b16 %v823, %v822
        %v876 = vpack.c.b16 %v825, %v824
        %v877 = vpack.c.b16 %v827, %v826
        %v878 = vpack.c.b16 %v829, %v828
        %v879 = vpack.c.b16 %v831, %v830
        %v880 = vpack.c.b16 %v833, %v832
        %v881 = vpack.c.b16 %v835, %v834
        %v882 = vpack.c.b16 %v837, %v836
        %v883 = vpack.c.b16 %v839, %v838
        %v884 = vpack.c.b16 %v841, %v840
        %v885 = vpack.c.b16 %v843, %v842
        %v886 = vpack.c.b16 %v845, %v844
        %v887 = vpack.c.b16 %v847, %v846
        %v888 = vpack.c.b16 %v849, %v848
        %v889 = vpack.c.b16 %v851, %v850
        %v890 = vpack.c.b16 %v853, %v852
        %v891 = vpack.c.b16 %v855, %v854
        %v892 = vpack.c.b16 %v857, %v856
        %v893 = vpack.c.b16 %v859, %v858
        %v894 = vpack.c.b16 %v861, %v860
        %v895 = vpack.c.b16 %v863, %v862
        %928 = vmatpush.bf16.msra.mxu0 %v871
        %929 = vmatpush.bf16.msra.mxu0 %v870
        %930 = vmatpush.bf16.msra.mxu0 %v869
        %931 = vmatpush.bf16.msra.mxu0 %v868
        %932 = vmatpush.bf16.msra.mxu0 %v867
        %933 = vmatpush.bf16.msra.mxu0 %v866
        %934 = vmatpush.bf16.msra.mxu0 %v865
        %935 = vmatpush.bf16.msra.mxu0 %v864
        %936 = vmatmul.bf16.gmra.mxu0 %v668
        %v937 = vpop.f32.mrf.mxu0
        %v938 = vadd.f32 0.0, %v937
        %v939 = vpop.f32.mrf.mxu0
        %940 = vdwg.mxu0
        %941 = vmatpush.bf16.msra.mxu0 %v879
        %942 = vmatpush.bf16.msra.mxu0 %v878
        %943 = vmatpush.bf16.msra.mxu0 %v877
        %944 = vmatpush.bf16.msra.mxu0 %v876
        %945 = vmatpush.bf16.msra.mxu0 %v875
        %946 = vmatpush.bf16.msra.mxu0 %v874
        %947 = vmatpush.bf16.msra.mxu0 %v873
        %948 = vmatpush.bf16.msra.mxu0 %v872
        %949 = vmatmul.bf16.gmra.mxu0 %v669
        %v950 = vpop.f32.mrf.mxu0
        %v951 = vadd.f32 %v938, %v950
        %v952 = vpop.f32.mrf.mxu0
        %953 = vdwg.mxu0
        %954 = vmatpush.bf16.msra.mxu0 %v887
        %955 = vmatpush.bf16.msra.mxu0 %v886
        %956 = vmatpush.bf16.msra.mxu0 %v885
        %957 = vmatpush.bf16.msra.mxu0 %v884
        %958 = vmatpush.bf16.msra.mxu0 %v883
        %959 = vmatpush.bf16.msra.mxu0 %v882
        %960 = vmatpush.bf16.msra.mxu0 %v881
        %961 = vmatpush.bf16.msra.mxu0 %v880
        %962 = vmatmul.bf16.gmra.mxu0 %v670
        %v963 = vpop.f32.mrf.mxu0
        %v964 = vadd.f32 %v951, %v963
        %v965 = vpop.f32.mrf.mxu0
        %966 = vdwg.mxu0
        %967 = vmatpush.bf16.msra.mxu0 %v895
        %968 = vmatpush.bf16.msra.mxu0 %v894
        %969 = vmatpush.bf16.msra.mxu0 %v893
        %970 = vmatpush.bf16.msra.mxu0 %v892
        %971 = vmatpush.bf16.msra.mxu0 %v891
        %972 = vmatpush.bf16.msra.mxu0 %v890
        %973 = vmatpush.bf16.msra.mxu0 %v889
        %974 = vmatpush.bf16.msra.mxu0 %v888
        %975 = vmatmul.bf16.gmra.mxu0 %v671
        %v976 = vpop.f32.mrf.mxu0
        %v977 = vadd.f32 %v964, %v976
        %v978 = vpop.f32.mrf.mxu0
        %979 = vdwg.mxu0
        %v980 = vadd.f32 %v667, %v977
        %981 = vst [vmem:[#allocation2] sm:$0xff] %v980
        // Predicated region
        $region53: #{mlp_forward.1} parent=39 // pred_check
          %p982 = pneg %p303
        $region54: #{mlp_forward.1} parent=39 // pred_check_branch
          %984 = sbr.rel (%p982) target = $region56
        $region55: #{mlp_forward.1} parent=39 // pred_region
          %v985 = vld [vmem:[#allocation2] sm:$0xff]
          %v986 = vld [vmem:[%s4] sm:$0x1]
          %v988 = vperm.slane %v986, 0
          %v990 = vadd.f32 %v985, %v988
          %991 = vst [vmem:[%s291] sm:$0xff] %v990
        $region56: #{mlp_forward.1} parent=39 // pred_fallthru
          _
        %s992 = sand.u32 %s166, 1
        %s993 = scalar_lea.sflag [#allocation5], %s992
        %s994 = sand.u32 %s166, 1
        %s995 = smul.addr %s994, 8
        %s996 = scalar_lea.vmem [#allocation8], %s995
        // Predicated region
        $region57: #{mlp_forward.1} parent=39 // pred_check
          %p997 = pneg %p176
        $region58: #{mlp_forward.1} parent=39 // pred_check_branch
          %999 = sbr.rel (%p997) target = $region60
        $region59: #{mlp_forward.1} parent=39 // pred_region
          %1001 = vsyncadd %s993, 0
          %s1002 = smul.addr %s25, 8
          %s1003 = scalar_lea.hbm %s5, %s1002
          %s1005 = sshll.u32 %s996, 4
          %s1006 = int_to_ptr.vmem [resolvable:$true] %s1005
          %s1007 = sshll.u32 %s1003, 4
          %s1008 = int_to_ptr.hbm [resolvable:$true] %s1007
          %1010 = dma.vmem_to_hbm [thread:$0]  %s1006, 128, %s1008, %s993
        $region60: #{mlp_forward.1} parent=39 // pred_fallthru
          _
      $region40: #{mlp_forward.1} parent=5 // pred_fallthru
        _
      %p1011 = scmp.le.s32.totalorder 2, %s16
      // Predicated region
      $region61: #{mlp_forward.1} parent=5 // pred_check
        %p1012 = pneg %p1011
      $region62: #{mlp_forward.1} parent=5 // pred_check_branch
        %1014 = sbr.rel (%p1012) target = $region64
      $region63: #{mlp_forward.1} parent=5 // pred_region
        %s1015 = ssub.s32 %s16, 2
        // Predicated region
        $region65: #{mlp_forward.1} parent=63 // pred_check
          %p1016 = pneg %p182
        $region66: #{mlp_forward.1} parent=63 // pred_check_branch
          %1018 = sbr.rel (%p1016) target = $region68
        $region67: #{mlp_forward.1} parent=63 // pred_region
          %s1019 = sand.u32 %s167, 1
          %s1020 = scalar_lea.sflag [#allocation5], %s1019
          %s1021 = sand.u32 %s167, 1
          %s1022 = smul.addr %s1021, 8
          %s1023 = scalar_lea.vmem [#allocation8], %s1022
          %1025 = dma.done %s1020, 128
        $region68: #{mlp_forward.1} parent=63 // pred_fallthru
          _
      $region64: #{mlp_forward.1} parent=5 // pred_fallthru
        _
    $region6: #{mlp_forward.1} parent=1 // loop_footer
      %s20 = sadd.s32 1, %s16
    $region7: #{mlp_forward.1} parent=1 // loop_footer_branch
      %15 = sbr.rel target = $region3
    $region8: #{mlp_forward.1} parent=1 // loop_exit
      _
    %1026 = vsyncpa [#allocation4], 1
    %s1027 = scalar_lea.sflag [#allocation4], 1
    %1028 = vsyncpa %s1027, 1
    %1029 = vsyncpa [#allocation7], 1
    %1030 = vsyncpa [#allocation5], 1
    %s1031 = scalar_lea.sflag [#allocation5], 1
    %1032 = vsyncpa %s1031, 1

</llo_original>
